<compile_context>
chip_gen: v7x
topology: tpu7x:2x2x1
jax: 0.10.0
libtpu: 0.0.40
codegen_flags: <defaults>
</compile_context>

<pallas_src>
import jax
import jax.numpy as jnp
from jax.experimental import pallas as pl
from jax.experimental.pallas import tpu as pltpu


def _round_up(x: int, m: int) -> int:
    return ((x + m - 1) // m) * m


def _resident_spec(block_shape, index_map):
    """BlockSpec for a grid-invariant operand: request a single VMEM buffer.

    Returns (spec, is_single_buffered) so the caller can size the VMEM budget
    correctly if the single-buffer request is unavailable (silent double-buffer).
    """
    if hasattr(pl, "Buffered"):
        try:
            return pl.BlockSpec(block_shape, index_map,
                                pipeline_mode=pl.Buffered(1)), True
        except TypeError:
            pass
    return pl.BlockSpec(block_shape, index_map), False


def projector_kernel(x_ref, wt_ref, b_ref, o_ref):
    # x_ref:  (tm, D)  activation tile in its native dtype (cast in-kernel)
    # wt_ref: (D, H)   pre-transposed weight, resident across the whole grid
    # b_ref:  (1, H)   f32 bias (broadcast over rows)
    # o_ref:  (tm, H)  output tile
    # NOTE: no cross-row reductions here -- the last (partial) x tile contains
    # undefined rows whose outputs are masked on store.
    x = x_ref[...].astype(wt_ref.dtype)
    acc = jnp.dot(x, wt_ref[...], preferred_element_type=jnp.float32)
    # TODO(synk): if Mosaic materializes the full (tm, H) f32 acc as scratch, tile
    # H in ~512-wide chunks here to shrink the intermediate (matters on v7x).
    o_ref[...] = (acc + b_ref[...]).astype(o_ref.dtype)


def prepare_projector_params(weight, bias, *, compute_dtype=jnp.bfloat16):
    """One-time parameter prep. Do this at load time, NOT in the jitted hot path.

    weight: (H, D) in PyTorch nn.Linear layout.
    Returns (wt: (D, H) in compute_dtype, bias2d: (1, H) float32).
    """
    wt = jnp.asarray(weight).T.astype(compute_dtype)           # (D, H)
    b2 = jnp.asarray(bias).reshape(1, -1).astype(jnp.float32)  # (1, H)
    return wt, b2


def qwen2_audio_projector(audio_features, wt, bias2d, *, tm=512, out_dtype=None):
    """audio_features: (B, S, D); wt: (D, H) pre-transposed; bias2d: (1, H) f32.

    Returns (B, S, H).  out_dtype defaults to the weight's compute dtype (bf16)
    to halve output HBM traffic; pass out_dtype=jnp.float32 to keep f32 outputs.
    """
    B, S, D = audio_features.shape
    Dw, H = wt.shape
    assert D == Dw, f"feature dim mismatch: {D} vs {Dw}"
    assert bias2d.shape == (1, H)

    M = B * S
    out_dtype = out_dtype or wt.dtype
    x2 = audio_features.reshape(M, D)        # metadata-only reshape, no HBM pass

    # --- M tile selection -------------------------------------------------
    # Multiple of 16 (bf16 sublane packing), clamped to the problem size.
    tm = max(16, min(int(tm), _round_up(M, 16)))
    tm = _round_up(tm, 16)
    n_tiles = pl.cdiv(M, tm)
    # Even tile count (when >1) so the "parallel" axis splits evenly across the
    # two TensorCores on v7x. No effect on v5e/v6e (single TC).
    if n_tiles > 1 and n_tiles % 2 == 1:
        tm = _round_up(pl.cdiv(M, n_tiles + 1), 16)
        n_tiles = pl.cdiv(M, tm)
    grid = (n_tiles,)

    itemsize = lambda dt: jnp.dtype(dt).itemsize
    x_isz, w_isz, o_isz = itemsize(x2.dtype), itemsize(wt.dtype), itemsize(out_dtype)

    wt_spec, wt_single = _resident_spec((D, H), lambda i: (0, 0))
    b_spec, b_single = _resident_spec((1, H), lambda i: (0, 0))

    # --- VMEM budget derived from the actual footprint ---------------------
    wt_bytes = D * H * w_isz * (1 if wt_single else 2)
    b_bytes = H * 4 * (1 if b_single else 2)
    x_bytes = 2 * tm * D * x_isz           # double-buffered x tiles
    o_bytes = 2 * tm * H * o_isz           # double-buffered out tiles
    acc_bytes = tm * H * 4                 # f32 matmul intermediate
    vmem_needed = int(1.25 * (wt_bytes + b_bytes + x_bytes + o_bytes + acc_bytes))
    vmem_limit = min(100 * 1024 * 1024, max(32 * 1024 * 1024, vmem_needed))

    cost = pl.CostEstimate(
        flops=2 * M * D * H,
        transcendentals=0,
        bytes_accessed=(M * D * x_isz          # x (read once)
                        + D * H * w_isz        # weight (read once, resident)
                        + H * 4                # bias
                        + M * H * o_isz),      # output
    )

    out = pl.pallas_call(
        projector_kernel,
        out_shape=jax.ShapeDtypeStruct((M, H), out_dtype),
        grid_spec=pltpu.PrefetchScalarGridSpec(
            num_scalar_prefetch=0,
            grid=grid,
            in_specs=[
                pl.BlockSpec((tm, D), lambda i: (i, 0)),   # x tile (pipelined)
                wt_spec,                                   # full W^T, 1 buffer
                b_spec,                                    # bias,     1 buffer
            ],
            out_specs=pl.BlockSpec((tm, H), lambda i: (i, 0)),
        ),
        compiler_params=pltpu.CompilerParams(
            dimension_semantics=("parallel",),   # independent M tiles -> megacore
            vmem_limit_bytes=vmem_limit,
        ),
        cost_estimate=cost,
    )(x2, wt, bias2d)

    return out.reshape(B, S, H)


if __name__ == "__main__":
    # Small synthetic config: audio d_model=32, text hidden_size=64.
    batch, seq, d_model, hidden_size = 2, 8, 32, 64

    key = jax.random.PRNGKey(0)
    k_x, k_w, k_b = jax.random.split(key, 3)

    audio_features = jax.random.normal(k_x, (batch, seq, d_model), dtype=jnp.float32)
    # Deterministic "nn.Linear"-style params (synthetic, not a checkpoint load).
    weight = jax.random.normal(k_w, (hidden_size, d_model), dtype=jnp.float32) * 0.02
    bias = jax.random.normal(k_b, (hidden_size,), dtype=jnp.float32) * 0.01

    # One-time param prep (pre-transpose + bf16 cast) outside the hot path.
    wt, b2 = prepare_projector_params(weight, bias, compute_dtype=jnp.bfloat16)

    out = qwen2_audio_projector(audio_features, wt, b2, tm=512)
    out = jax.block_until_ready(out)

    # Pure-JAX reference: bf16 operand rounding, f32 accumulation, f32 bias add.
    x_q = audio_features.astype(jnp.bfloat16).astype(jnp.float32)
    w_q = weight.astype(jnp.bfloat16).astype(jnp.float32)
    ref = jnp.einsum("bsd,hd->bsh", x_q, w_q) + bias

    assert out.shape == (batch, seq, hidden_size)
    assert out.dtype == jnp.bfloat16  # bf16 output (halves output HBM traffic)
    out_f32 = out.astype(jnp.float32)
    err = float(jnp.max(jnp.abs(out_f32 - ref)))
    assert jnp.allclose(out_f32, ref, atol=2e-2, rtol=2e-2), f"max abs err {err}"

    print("KERNEL_OK")
</pallas_src>

<mosaic_0001>
module attributes {stable_mosaic.version = 11 : i64} {
  func.func @projector_kernel(%arg0: i32, %arg1: memref<16x32xf32, #tpu.memory_space<vmem>>, %arg2: memref<32x64xbf16, #tpu.memory_space<vmem>>, %arg3: memref<1x64xf32, #tpu.memory_space<vmem>>, %arg4: memref<16x64xbf16, #tpu.memory_space<vmem>>) attributes {dimension_semantics = [#tpu.dimension_semantics<parallel>], iteration_bounds = array<i64: 1>, scalar_prefetch = 0 : i64, scratch_operands = 0 : i64, tpu.core_type = #tpu.core_type<tc>, window_params = [{transform_indices = @transform_0, window_bounds = array<i64: 16, 32>}, {pipeline_mode = #tpu.pipeline_mode<synchronous>, transform_indices = @transform_1, window_bounds = array<i64: 32, 64>}, {pipeline_mode = #tpu.pipeline_mode<synchronous>, transform_indices = @transform_2, window_bounds = array<i64: 1, 64>}, {transform_indices = @transform_3, window_bounds = array<i64: 16, 64>}]} {
    %c0 = arith.constant 0 : index
    %c0_0 = arith.constant 0 : index
    %0 = vector.load %arg1[%c0, %c0_0] : memref<16x32xf32, #tpu.memory_space<vmem>>, vector<16x32xf32>
    %1 = arith.truncf %0 : vector<16x32xf32> to vector<16x32xbf16>
    %c0_1 = arith.constant 0 : index
    %c0_2 = arith.constant 0 : index
    %2 = vector.load %arg2[%c0_1, %c0_2] : memref<32x64xbf16, #tpu.memory_space<vmem>>, vector<32x64xbf16>
    %cst = arith.constant dense<0.000000e+00> : vector<16x64xf32>
    %3 = tpu.matmul %1, %2, %cst {dimension_numbers = #tpu.dot_dimension_numbers<[1], [0], [0], [1], [0, 0, 1, 1], [], []>} : vector<16x32xbf16>, vector<32x64xbf16>, vector<16x64xf32> -> vector<16x64xf32>
    %c0_3 = arith.constant 0 : index
    %c0_4 = arith.constant 0 : index
    %4 = vector.load %arg3[%c0_3, %c0_4] : memref<1x64xf32, #tpu.memory_space<vmem>>, vector<1x64xf32>
    %5 = vector.broadcast %4 : vector<1x64xf32> to vector<16x64xf32>
    %6 = arith.addf %3, %5 : vector<16x64xf32>
    %7 = arith.truncf %6 : vector<16x64xf32> to vector<16x64xbf16>
    %c0_5 = arith.constant 0 : index
    %c0_6 = arith.constant 0 : index
    %8 = vector.load %arg4[%c0_5, %c0_6] : memref<16x64xbf16, #tpu.memory_space<vmem>>, vector<16x64xbf16>
    tpu.vector_store %arg4[%c0_5, %c0_6], %7 {strides = array<i32>} : memref<16x64xbf16, #tpu.memory_space<vmem>>, vector<16x64xbf16>,
    return
  }
  func.func @transform_0(%arg0: i32) -> (i32, i32) {
    %c0_i32 = arith.constant 0 : i32
    %c0_i32_0 = arith.constant 0 : i32
    return %arg0, %c0_i32 : i32, i32
  }
  func.func @transform_1(%arg0: i32) -> (i32, i32) {
    %c0_i32 = arith.constant 0 : i32
    %c0_i32_0 = arith.constant 0 : i32
    %c0_i32_1 = arith.constant 0 : i32
    return %c0_i32, %c0_i32_0 : i32, i32
  }
  func.func @transform_2(%arg0: i32) -> (i32, i32) {
    %c0_i32 = arith.constant 0 : i32
    %c0_i32_0 = arith.constant 0 : i32
    %c0_i32_1 = arith.constant 0 : i32
    return %c0_i32, %c0_i32_0 : i32, i32
  }
  func.func @transform_3(%arg0: i32) -> (i32, i32) {
    %c0_i32 = arith.constant 0 : i32
    %c0_i32_0 = arith.constant 0 : i32
    return %arg0, %c0_i32 : i32, i32
  }
}

</mosaic_0001>

<llo_original>
// kernel: tpu_custom_call.1
$region0: #{tpu_custom_call.1}
  #allocation0 [shape = 'u32[]', space=smem, size = 0x4, offset = 0x4, fixed_abs, tag = 'smem constant byte address 0x4 - core index']
  #allocation1 [shape = 'u32[144,128]{1,0:T(1,128)}', space=vmem, size = 0x12000, scoped, tag = 'internal scratch']
  %s0 = inlined_call_operand.hbm [shape: f32[16,32], index: 0, kind: input, shape index: {}]
  %s1 = inlined_call_operand.hbm [shape: bf16[32,64], index: 1, kind: input, shape index: {}]
  %s2 = inlined_call_operand.vmem [shape: f32[1,64], index: 2, kind: input, shape index: {}]
  %s3 = inlined_call_operand.hbm [shape: bf16[16,64], index: 3, kind: output, shape index: {}]
  %s4 = sld [smem:[#allocation0]]
  $region30: #{tpu_custom_call.1} parent=0
    _
  %s6 = ssub.s32 1, %s4
  %s7 = scalar_select 0, %s6, %s4
  $region1: #{tpu_custom_call.1} parent=0
    #allocation2 [shape = 'u8[8192]{0}', space=vmem, size = 0x2000, scoped, tag = 'input window, operand 0, single buffered']
    #allocation3 [shape = 's32[1]{0}', space=sflag, size = 0x4, scoped, tag = 'scoped memory for tpu_custom_call.1']
    #allocation4 [shape = 's32[1]{0}', space=sflag, size = 0x4, scoped, tag = 'scoped memory for tpu_custom_call.1']
    #allocation5 [shape = 'u8[8192]{0}', space=vmem, size = 0x2000, scoped, tag = 'input window, operand 1, single buffered']
    #allocation6 [shape = 's32[1]{0}', space=sflag, size = 0x4, scoped, tag = 'scoped memory for tpu_custom_call.1']
    #allocation7 [shape = 'u8[4096]{0}', space=vmem, size = 0x1000, scoped, tag = 'output window, operand 0, single buffered']
    %8 = vsyncpa [#allocation3], 0
    %9 = vsyncpa [#allocation6], 0
    %10 = vsyncpa [#allocation4], 0
    // Predicated region
    $region2: #{tpu_custom_call.1} parent=1 // pred_check
      _
    $region3: #{tpu_custom_call.1} parent=1 // pred_check_branch
      %12 = sbr.rel (0) target = $region5
    $region4: #{tpu_custom_call.1} parent=1 // pred_region
      %s14 = ssub.s32 256, 256
      %15 = vsyncadd [#allocation3], %s14
      %s16 = sshll.u32 [#allocation2], 4
      %s17 = int_to_ptr.vmem [resolvable:$true] %s16
      %22 = dma.hbm_to_vmem [thread:$0]  %s0, 256, %s17, [#allocation3], 128, 128, 8
    $region5: #{tpu_custom_call.1} parent=1 // pred_fallthru
      _
    // Predicated region
    $region6: #{tpu_custom_call.1} parent=1 // pred_check
      _
    $region7: #{tpu_custom_call.1} parent=1 // pred_check_branch
      %24 = sbr.rel (0) target = $region9
    $region8: #{tpu_custom_call.1} parent=1 // pred_region
      %s26 = ssub.s32 256, 256
      %27 = vsyncadd [#allocation6], %s26
      %s28 = sshll.u32 [#allocation5], 4
      %s29 = int_to_ptr.vmem [resolvable:$true] %s28
      %34 = dma.hbm_to_vmem [thread:$0]  %s1, 256, %s29, [#allocation6], 64, 64, 4
    $region9: #{tpu_custom_call.1} parent=1 // pred_fallthru
      _
    // Predicated region
    $region10: #{tpu_custom_call.1} parent=1 // pred_check
      _
    $region11: #{tpu_custom_call.1} parent=1 // pred_check_branch
      %36 = sbr.rel (0) target = $region13
    $region12: #{tpu_custom_call.1} parent=1 // pred_region
      _
    $region13: #{tpu_custom_call.1} parent=1 // pred_fallthru
      _
    // Predicated region
    $region14: #{tpu_custom_call.1} parent=1 // pred_check
      _
    $region15: #{tpu_custom_call.1} parent=1 // pred_check_branch
      %38 = sbr.rel (0) target = $region17
    $region16: #{tpu_custom_call.1} parent=1 // pred_region
      %39 = dma.done [#allocation3], 256
    $region17: #{tpu_custom_call.1} parent=1 // pred_fallthru
      _
    // Predicated region
    $region18: #{tpu_custom_call.1} parent=1 // pred_check
      _
    $region19: #{tpu_custom_call.1} parent=1 // pred_check_branch
      %41 = sbr.rel (0) target = $region21
    $region20: #{tpu_custom_call.1} parent=1 // pred_region
      %42 = dma.done [#allocation6], 256
    $region21: #{tpu_custom_call.1} parent=1 // pred_fallthru
      _
    %v44 = vld [vmem:[#allocation2] sm:$0xff]
    %v45 = vld [vmem:[#allocation2 + $0x8] sm:$0xff]
    %v46 = vpack.c.bf16 %v45, %v44
    %v47 = vld [vmem:[#allocation5] sm:$0xf]
    %v48 = vld [vmem:[#allocation5 + $0x4] sm:$0xf]
    %v49 = vld [vmem:[#allocation5 + $0x8] sm:$0xf]
    %v50 = vld [vmem:[#allocation5 + $0xc] sm:$0xf]
    %v51 = vld [vmem:[%s2] sm:$0x1]
    %v53 = vlaneseq
    %v54 = vshrl.u32 %v53, 7
    %v55 = vsub.s32 0, %v54
    %v56 = vrot.slane %v51, %v55
    %v62 = vunpack.c.l.b16 %v47
    %v63 = vunpack.c.l.b16 %v48
    %v64 = vunpack.c.l.b16 %v49
    %v65 = vunpack.c.l.b16 %v50
    %v66 = vpack.c.b16 %v63, %v62
    %v67 = vpack.c.b16 %v65, %v64
    %vm70 = vcmask 261120
    %v72 = vsel %vm70, %v46, 0
    %74 = vmatprep.subr.bf16.mxu0 0
    %75 = vmatpush1.bf16.msra.mxu0 %v66
    %76 = vmatprep.subr.bf16.mxu0 0
    %77 = vmatpush1.bf16.msra.mxu0 %v67
    %78 = vmatprep.subr.bf16.mxu0 0
    %79 = vmatpush1.bf16.msra.mxu0 0
    %80 = vmatprep.subr.bf16.mxu0 0
    %81 = vmatpush1.bf16.msra.mxu0 0
    %82 = vmatprep.subr.bf16.mxu0 0
    %83 = vmatpush1.bf16.msra.mxu0 0
    %84 = vmatprep.subr.bf16.mxu0 0
    %85 = vmatpush1.bf16.msra.mxu0 0
    %86 = vmatprep.subr.bf16.mxu0 0
    %87 = vmatpush1.bf16.msra.mxu0 0
    %88 = vmatprep.subr.bf16.mxu0 0
    %89 = vmatpush1.bf16.msra.mxu0 0
    %90 = vmatprep.subr.bf16.mxu0 0
    %91 = vmatpush1.bf16.msra.mxu0 0
    %92 = vmatprep.subr.bf16.mxu0 0
    %93 = vmatpush1.bf16.msra.mxu0 0
    %94 = vmatprep.subr.bf16.mxu0 0
    %95 = vmatpush1.bf16.msra.mxu0 0
    %96 = vmatprep.subr.bf16.mxu0 0
    %97 = vmatpush1.bf16.msra.mxu0 0
    %98 = vmatprep.subr.bf16.mxu0 0
    %99 = vmatpush1.bf16.msra.mxu0 0
    %100 = vmatprep.subr.bf16.mxu0 0
    %101 = vmatpush1.bf16.msra.mxu0 0
    %102 = vmatprep.subr.bf16.mxu0 0
    %103 = vmatpush1.bf16.msra.mxu0 0
    %104 = vmatprep.subr.bf16.mxu0 0
    %105 = vmatpush1.bf16.msra.mxu0 0
    %106 = vmatprep.mubr.bf16.mxu0 0
    %107 = vmatmul.mubr.bf16.gmra.mrb[0].mxu0 %v72
    %v108 = vpop.f32.mrb[0].mxu0
    %v109 = vadd.f32 %v56, %v108
    %v110 = vpop.f32.mrb[0].mxu0
    %v111 = vpop.f32.mrb[0].mxu0
    %v112 = vadd.f32 %v56, %v111
    %v113 = vpop.f32.mrb[0].mxu0
    %114 = vdwg.mxu0
    %v115 = vpack.c.bf16 %v112, %v109
    %v117 = vunpack.c.l.b16 %v115
    %v118 = vunpack.c.h.b16 %v115
    %v119 = vpack.c.b16 %v117, %v117
    %v120 = vpack.c.b16 %v118, %v118
    %vm123 = vcmask 519168
    %124 = vst.msk [vmem:[#allocation7] sm:$0xf] %vm123, %v119
    %125 = vst.msk [vmem:[#allocation7 + $0x4] sm:$0xf] %vm123, %v120
    // Predicated region
    $region22: #{tpu_custom_call.1} parent=1 // pred_check
      _
    $region23: #{tpu_custom_call.1} parent=1 // pred_check_branch
      %127 = sbr.rel (0) target = $region25
    $region24: #{tpu_custom_call.1} parent=1 // pred_region
      %s129 = ssub.s32 128, 128
      %130 = vsyncadd [#allocation4], %s129
      %s131 = sshll.u32 [#allocation7], 4
      %s132 = int_to_ptr.vmem [resolvable:$true] %s131
      %137 = dma.vmem_to_hbm [thread:$0]  %s132, 128, %s3, [#allocation4], 64, 64, 4
    $region25: #{tpu_custom_call.1} parent=1 // pred_fallthru
      _
    // Predicated region
    $region26: #{tpu_custom_call.1} parent=1 // pred_check
      _
    $region27: #{tpu_custom_call.1} parent=1 // pred_check_branch
      %139 = sbr.rel (0) target = $region29
    $region28: #{tpu_custom_call.1} parent=1 // pred_region
      %140 = dma.done [#allocation4], 128
    $region29: #{tpu_custom_call.1} parent=1 // pred_fallthru
      _
    %141 = vsyncpa [#allocation3], 1
    %142 = vsyncpa [#allocation6], 1
    %143 = vsyncpa [#allocation4], 1

</llo_original>
